<compile_context>
chip_gen: v7x
topology: tpu7x:2x2x1
jax: 0.10.0
libtpu: 0.0.40
codegen_flags: <defaults>
</compile_context>

<pallas_src>
import jax
import jax.numpy as jnp
from jax.experimental import pallas as pl
from jax.experimental.pallas import tpu as pltpu

_LANE = 128          # lane width: pad final output dim to a multiple of this
_SUBLANE = 8         # f32 sublane multiple for the batch tile
_MAX_TILE_B = 512    # batch tile upper bound (keeps x/out tiles modest in VMEM)


def _mlp_kernel(x_ref, w1_ref, b1_ref, w2_ref, b2_ref, w3_ref, b3_ref, o_ref):
    # Weights/biases are full blocks resident in VMEM; x/o are batch tiles.
    x = x_ref[...]                                          # [TB, D_in]
    h1 = jnp.dot(x, w1_ref[...], preferred_element_type=jnp.float32)
    h1 = jnp.maximum(h1 + b1_ref[...], 0.0)                 # ReLU; bias [1,H] broadcasts
    # Dropout -> identity (eval mode)
    h2 = jnp.dot(h1, w2_ref[...], preferred_element_type=jnp.float32)
    h2 = jnp.maximum(h2 + b2_ref[...], 0.0)                 # ReLU
    # Dropout -> identity (eval mode)
    out = jnp.dot(h2, w3_ref[...], preferred_element_type=jnp.float32)
    o_ref[...] = (out + b3_ref[...]).astype(o_ref.dtype)    # [TB, 128] lane-dense


def food_processing_nn_forward(x, params, *, max_tile_b=_MAX_TILE_B):
    """x: [B, input_size] float32; params: dict of transposed weights/biases."""
    w1, b1, w2, b2, w3, b3 = (params["w1"], params["b1"], params["w2"],
                              params["b2"], params["w3"], params["b3"])
    B, _ = x.shape
    h2_dim = w3.shape[0]
    n_out = w3.shape[1]

    # --- Pad final layer to a lane-dense (multiple of 128) output width. ---
    n_pad = max(_LANE, ((n_out + _LANE - 1) // _LANE) * _LANE)
    w3p = jnp.zeros((h2_dim, n_pad), w3.dtype).at[:, :n_out].set(w3)
    b3p = jnp.zeros((1, n_pad), b3.dtype).at[:, :n_out].set(b3)

    # --- Batch tile: multiple of 8 sublanes, capped at max_tile_b. ---
    tb = min(max_tile_b, B)
    tb = max(_SUBLANE, ((tb + _SUBLANE - 1) // _SUBLANE) * _SUBLANE)
    b_pad = ((B + tb - 1) // tb) * tb
    if b_pad != B:
        x = jnp.pad(x, ((0, b_pad - B), (0, 0)))
    num_tiles = b_pad // tb

    def full(a):
        nd = a.ndim
        return pl.BlockSpec(a.shape, lambda i, _nd=nd: (0,) * _nd)

    out_padded = pl.pallas_call(
        _mlp_kernel,
        out_shape=jax.ShapeDtypeStruct((b_pad, n_pad), jnp.float32),
        grid=(num_tiles,),
        in_specs=[
            pl.BlockSpec((tb, x.shape[1]), lambda i: (i, 0)),   # x: tiled on batch
            full(w1), full(b1), full(w2), full(b2),
            full(w3p), full(b3p),
        ],
        out_specs=pl.BlockSpec((tb, n_pad), lambda i: (i, 0)),
        compiler_params=pltpu.CompilerParams(
            dimension_semantics=("parallel",)),
    )(x, w1, b1, w2, b2, w3p, b3p)

    return out_padded[:B, :n_out]


def init_params(key, input_size, hidden_size=128):
    """Deterministic init mirroring nn.Linear shapes (stored transposed)."""
    h2 = hidden_size // 2
    ks = jax.random.split(key, 6)

    def linear(kw, kb, fan_in, fan_out):
        bound = 1.0 / jnp.sqrt(fan_in)
        w = jax.random.uniform(kw, (fan_in, fan_out), jnp.float32, -bound, bound)
        b = jax.random.uniform(kb, (1, fan_out), jnp.float32, -bound, bound)
        return w, b

    w1, b1 = linear(ks[0], ks[1], input_size, hidden_size)
    w2, b2 = linear(ks[2], ks[3], hidden_size, h2)
    w3, b3 = linear(ks[4], ks[5], h2, 4)
    return dict(w1=w1, b1=b1, w2=w2, b2=b2, w3=w3, b3=b3)


if __name__ == "__main__":
    key = jax.random.PRNGKey(0)
    k_x, k_p = jax.random.split(key)

    batch = 10            # deliberately not a multiple of 8: exercises padding
    input_size = 32
    hidden_size = 128

    x = jax.random.normal(k_x, (batch, input_size), dtype=jnp.float32)
    params = init_params(k_p, input_size, hidden_size)

    out = food_processing_nn_forward(x, params)
    jax.block_until_ready(out)

    # Cross-check against a pure-JAX reference of the same forward pass.
    def ref(x, p):
        h1 = jnp.maximum(x @ p["w1"] + p["b1"], 0.0)
        h2 = jnp.maximum(h1 @ p["w2"] + p["b2"], 0.0)
        return h2 @ p["w3"] + p["b3"]

    expected = ref(x, params)
    assert out.shape == (batch, 4), out.shape
    assert jnp.allclose(out, expected, atol=1e-5, rtol=1e-5)

    print("KERNEL_OK")
</pallas_src>

<mosaic_0001>
module attributes {stable_mosaic.version = 11 : i64} {
  func.func @_mlp_kernel(%arg0: i32, %arg1: memref<16x32xf32, #tpu.memory_space<vmem>>, %arg2: memref<32x128xf32, #tpu.memory_space<vmem>>, %arg3: memref<1x128xf32, #tpu.memory_space<vmem>>, %arg4: memref<128x64xf32, #tpu.memory_space<vmem>>, %arg5: memref<1x64xf32, #tpu.memory_space<vmem>>, %arg6: memref<64x128xf32, #tpu.memory_space<vmem>>, %arg7: memref<1x128xf32, #tpu.memory_space<vmem>>, %arg8: memref<16x128xf32, #tpu.memory_space<vmem>>) attributes {dimension_semantics = [#tpu.dimension_semantics<parallel>], iteration_bounds = array<i64: 1>, scalar_prefetch = 0 : i64, scratch_operands = 0 : i64, tpu.core_type = #tpu.core_type<tc>, window_params = [{transform_indices = @transform_0, window_bounds = array<i64: 16, 32>}, {pipeline_mode = #tpu.pipeline_mode<synchronous>, transform_indices = @transform_1, window_bounds = array<i64: 32, 128>}, {pipeline_mode = #tpu.pipeline_mode<synchronous>, transform_indices = @transform_2, window_bounds = array<i64: 1, 128>}, {pipeline_mode = #tpu.pipeline_mode<synchronous>, transform_indices = @transform_3, window_bounds = array<i64: 128, 64>}, {pipeline_mode = #tpu.pipeline_mode<synchronous>, transform_indices = @transform_4, window_bounds = array<i64: 1, 64>}, {pipeline_mode = #tpu.pipeline_mode<synchronous>, transform_indices = @transform_5, window_bounds = array<i64: 64, 128>}, {pipeline_mode = #tpu.pipeline_mode<synchronous>, transform_indices = @transform_6, window_bounds = array<i64: 1, 128>}, {transform_indices = @transform_7, window_bounds = array<i64: 16, 128>}]} {
    %c0 = arith.constant 0 : index
    %c0_0 = arith.constant 0 : index
    %0 = vector.load %arg1[%c0, %c0_0] : memref<16x32xf32, #tpu.memory_space<vmem>>, vector<16x32xf32>
    %c0_1 = arith.constant 0 : index
    %c0_2 = arith.constant 0 : index
    %1 = vector.load %arg2[%c0_1, %c0_2] : memref<32x128xf32, #tpu.memory_space<vmem>>, vector<32x128xf32>
    %cst = arith.constant dense<0.000000e+00> : vector<16x128xf32>
    %2 = tpu.matmul %0, %1, %cst {dimension_numbers = #tpu.dot_dimension_numbers<[1], [0], [0], [1], [0, 0, 1, 1], [], []>} : vector<16x32xf32>, vector<32x128xf32>, vector<16x128xf32> -> vector<16x128xf32>
    %c0_3 = arith.constant 0 : index
    %c0_4 = arith.constant 0 : index
    %3 = vector.load %arg3[%c0_3, %c0_4] : memref<1x128xf32, #tpu.memory_space<vmem>>, vector<1x128xf32>
    %4 = vector.broadcast %3 : vector<1x128xf32> to vector<16x128xf32>
    %5 = arith.addf %2, %4 : vector<16x128xf32>
    %cst_5 = arith.constant 0.000000e+00 : f32
    %6 = vector.broadcast %cst_5 : f32 to vector<16x128xf32>
    %7 = arith.maximumf %5, %6 : vector<16x128xf32>
    %c0_6 = arith.constant 0 : index
    %c0_7 = arith.constant 0 : index
    %8 = vector.load %arg4[%c0_6, %c0_7] : memref<128x64xf32, #tpu.memory_space<vmem>>, vector<128x64xf32>
    %cst_8 = arith.constant dense<0.000000e+00> : vector<16x64xf32>
    %9 = tpu.matmul %7, %8, %cst_8 {dimension_numbers = #tpu.dot_dimension_numbers<[1], [0], [0], [1], [0, 0, 1, 1], [], []>} : vector<16x128xf32>, vector<128x64xf32>, vector<16x64xf32> -> vector<16x64xf32>
    %c0_9 = arith.constant 0 : index
    %c0_10 = arith.constant 0 : index
    %10 = vector.load %arg5[%c0_9, %c0_10] : memref<1x64xf32, #tpu.memory_space<vmem>>, vector<1x64xf32>
    %11 = vector.broadcast %10 : vector<1x64xf32> to vector<16x64xf32>
    %12 = arith.addf %9, %11 : vector<16x64xf32>
    %cst_11 = arith.constant 0.000000e+00 : f32
    %13 = vector.broadcast %cst_11 : f32 to vector<16x64xf32>
    %14 = arith.maximumf %12, %13 : vector<16x64xf32>
    %c0_12 = arith.constant 0 : index
    %c0_13 = arith.constant 0 : index
    %15 = vector.load %arg6[%c0_12, %c0_13] : memref<64x128xf32, #tpu.memory_space<vmem>>, vector<64x128xf32>
    %cst_14 = arith.constant dense<0.000000e+00> : vector<16x128xf32>
    %16 = tpu.matmul %14, %15, %cst_14 {dimension_numbers = #tpu.dot_dimension_numbers<[1], [0], [0], [1], [0, 0, 1, 1], [], []>} : vector<16x64xf32>, vector<64x128xf32>, vector<16x128xf32> -> vector<16x128xf32>
    %c0_15 = arith.constant 0 : index
    %c0_16 = arith.constant 0 : index
    %17 = vector.load %arg7[%c0_15, %c0_16] : memref<1x128xf32, #tpu.memory_space<vmem>>, vector<1x128xf32>
    %18 = vector.broadcast %17 : vector<1x128xf32> to vector<16x128xf32>
    %19 = arith.addf %16, %18 : vector<16x128xf32>
    %c0_17 = arith.constant 0 : index
    %c0_18 = arith.constant 0 : index
    %20 = vector.load %arg8[%c0_17, %c0_18] : memref<16x128xf32, #tpu.memory_space<vmem>>, vector<16x128xf32>
    tpu.vector_store %arg8[%c0_17, %c0_18], %19 {strides = array<i32>} : memref<16x128xf32, #tpu.memory_space<vmem>>, vector<16x128xf32>,
    return
  }
  func.func @transform_0(%arg0: i32) -> (i32, i32) {
    %c0_i32 = arith.constant 0 : i32
    %c0_i32_0 = arith.constant 0 : i32
    return %arg0, %c0_i32 : i32, i32
  }
  func.func @transform_1(%arg0: i32) -> (i32, i32) {
    %c0_i32 = arith.constant 0 : i32
    %c0_i32_0 = arith.constant 0 : i32
    %c0_i32_1 = arith.constant 0 : i32
    return %c0_i32, %c0_i32_0 : i32, i32
  }
  func.func @transform_2(%arg0: i32) -> (i32, i32) {
    %c0_i32 = arith.constant 0 : i32
    %c0_i32_0 = arith.constant 0 : i32
    %c0_i32_1 = arith.constant 0 : i32
    return %c0_i32, %c0_i32_0 : i32, i32
  }
  func.func @transform_3(%arg0: i32) -> (i32, i32) {
    %c0_i32 = arith.constant 0 : i32
    %c0_i32_0 = arith.constant 0 : i32
    %c0_i32_1 = arith.constant 0 : i32
    return %c0_i32, %c0_i32_0 : i32, i32
  }
  func.func @transform_4(%arg0: i32) -> (i32, i32) {
    %c0_i32 = arith.constant 0 : i32
    %c0_i32_0 = arith.constant 0 : i32
    %c0_i32_1 = arith.constant 0 : i32
    return %c0_i32, %c0_i32_0 : i32, i32
  }
  func.func @transform_5(%arg0: i32) -> (i32, i32) {
    %c0_i32 = arith.constant 0 : i32
    %c0_i32_0 = arith.constant 0 : i32
    %c0_i32_1 = arith.constant 0 : i32
    return %c0_i32, %c0_i32_0 : i32, i32
  }
  func.func @transform_6(%arg0: i32) -> (i32, i32) {
    %c0_i32 = arith.constant 0 : i32
    %c0_i32_0 = arith.constant 0 : i32
    %c0_i32_1 = arith.constant 0 : i32
    return %c0_i32, %c0_i32_0 : i32, i32
  }
  func.func @transform_7(%arg0: i32) -> (i32, i32) {
    %c0_i32 = arith.constant 0 : i32
    %c0_i32_0 = arith.constant 0 : i32
    return %arg0, %c0_i32 : i32, i32
  }
}

</mosaic_0001>

<llo_original>
// kernel: tpu_custom_call.1
$region0: #{tpu_custom_call.1}
  #allocation0 [shape = 'u32[]', space=smem, size = 0x4, offset = 0x4, fixed_abs, tag = 'smem constant byte address 0x4 - core index']
  #allocation1 [shape = 'u32[144,128]{1,0:T(1,128)}', space=vmem, size = 0x12000, scoped, tag = 'internal scratch']
  %s0 = inlined_call_operand.vmem [shape: f32[16,32], index: 0, kind: input, shape index: {}]
  %s1 = inlined_call_operand.vmem [shape: f32[32,128], index: 1, kind: input, shape index: {}]
  %s2 = inlined_call_operand.vmem [shape: f32[1,128], index: 2, kind: input, shape index: {}]
  %s3 = inlined_call_operand.vmem [shape: f32[128,64], index: 3, kind: input, shape index: {}]
  %s4 = inlined_call_operand.vmem [shape: f32[1,64], index: 4, kind: input, shape index: {}]
  %s5 = inlined_call_operand.vmem [shape: f32[64,128], index: 5, kind: input, shape index: {}]
  %s6 = inlined_call_operand.vmem [shape: f32[1,128], index: 6, kind: input, shape index: {}]
  %s7 = inlined_call_operand.hbm [shape: f32[16,128], index: 7, kind: output, shape index: {}]
  %s8 = sld [smem:[#allocation0]]
  $region38: #{tpu_custom_call.1} parent=0
    _
  %s10 = ssub.s32 1, %s8
  %s11 = scalar_select 0, %s10, %s8
  $region1: #{tpu_custom_call.1} parent=0
    #allocation2 [shape = 'u8[8192]{0}', space=vmem, size = 0x2000, scoped, tag = 'output window, operand 0, single buffered']
    #allocation3 [shape = 's32[1]{0}', space=sflag, size = 0x4, scoped, tag = 'scoped memory for tpu_custom_call.1']
    %12 = vsyncpa [#allocation3], 0
    // Predicated region
    $region2: #{tpu_custom_call.1} parent=1 // pred_check
      _
    $region3: #{tpu_custom_call.1} parent=1 // pred_check_branch
      %14 = sbr.rel (0) target = $region5
    $region4: #{tpu_custom_call.1} parent=1 // pred_region
      _
    $region5: #{tpu_custom_call.1} parent=1 // pred_fallthru
      _
    // Predicated region
    $region6: #{tpu_custom_call.1} parent=1 // pred_check
      _
    $region7: #{tpu_custom_call.1} parent=1 // pred_check_branch
      %16 = sbr.rel (0) target = $region9
    $region8: #{tpu_custom_call.1} parent=1 // pred_region
      _
    $region9: #{tpu_custom_call.1} parent=1 // pred_fallthru
      _
    // Predicated region
    $region10: #{tpu_custom_call.1} parent=1 // pred_check
      _
    $region11: #{tpu_custom_call.1} parent=1 // pred_check_branch
      %18 = sbr.rel (0) target = $region13
    $region12: #{tpu_custom_call.1} parent=1 // pred_region
      _
    $region13: #{tpu_custom_call.1} parent=1 // pred_fallthru
      _
    // Predicated region
    $region14: #{tpu_custom_call.1} parent=1 // pred_check
      _
    $region15: #{tpu_custom_call.1} parent=1 // pred_check_branch
      %20 = sbr.rel (0) target = $region17
    $region16: #{tpu_custom_call.1} parent=1 // pred_region
      _
    $region17: #{tpu_custom_call.1} parent=1 // pred_fallthru
      _
    // Predicated region
    $region18: #{tpu_custom_call.1} parent=1 // pred_check
      _
    $region19: #{tpu_custom_call.1} parent=1 // pred_check_branch
      %22 = sbr.rel (0) target = $region21
    $region20: #{tpu_custom_call.1} parent=1 // pred_region
      _
    $region21: #{tpu_custom_call.1} parent=1 // pred_fallthru
      _
    // Predicated region
    $region22: #{tpu_custom_call.1} parent=1 // pred_check
      _
    $region23: #{tpu_custom_call.1} parent=1 // pred_check_branch
      %24 = sbr.rel (0) target = $region25
    $region24: #{tpu_custom_call.1} parent=1 // pred_region
      _
    $region25: #{tpu_custom_call.1} parent=1 // pred_fallthru
      _
    // Predicated region
    $region26: #{tpu_custom_call.1} parent=1 // pred_check
      _
    $region27: #{tpu_custom_call.1} parent=1 // pred_check_branch
      %26 = sbr.rel (0) target = $region29
    $region28: #{tpu_custom_call.1} parent=1 // pred_region
      _
    $region29: #{tpu_custom_call.1} parent=1 // pred_fallthru
      _
    %v27 = vld [vmem:[%s0] sm:$0xff]
    %v28 = vld [vmem:[%s0 + $0x8] sm:$0xff]
    %v29 = vld [vmem:[%s1] sm:$0xff]
    %v30 = vld [vmem:[%s1 + $0x8] sm:$0xff]
    %v31 = vld [vmem:[%s1 + $0x10] sm:$0xff]
    %v32 = vld [vmem:[%s1 + $0x18] sm:$0xff]
    %v33 = vld [vmem:[%s2] sm:$0x1]
    %v35 = vlaneseq
    %v36 = vshrl.u32 %v35, 7
    %v37 = vsub.s32 0, %v36
    %v38 = vrot.slane %v33, %v37
    %vm40 = vcmask 261120
    %v42 = vsel %vm40, %v27, 0
    %v45 = vsel %vm40, %v28, 0
    %47 = vmatprep.subr.mxu0 0.0
    %48 = vmatpush1.msra.mxu0 %v29
    %49 = vmatprep.subr.mxu0 0.0
    %50 = vmatpush1.msra.mxu0 %v30
    %51 = vmatprep.subr.mxu0 0.0
    %52 = vmatpush1.msra.mxu0 %v31
    %53 = vmatprep.subr.mxu0 0.0
    %54 = vmatpush1.msra.mxu0 %v32
    %55 = vmatprep.subr.mxu0 0.0
    %56 = vmatpush1.msra.mxu0 0.0
    %57 = vmatprep.subr.mxu0 0.0
    %58 = vmatpush1.msra.mxu0 0.0
    %59 = vmatprep.subr.mxu0 0.0
    %60 = vmatpush1.msra.mxu0 0.0
    %61 = vmatprep.subr.mxu0 0.0
    %62 = vmatpush1.msra.mxu0 0.0
    %63 = vmatprep.subr.mxu0 0.0
    %64 = vmatpush1.msra.mxu0 0.0
    %65 = vmatprep.subr.mxu0 0.0
    %66 = vmatpush1.msra.mxu0 0.0
    %67 = vmatprep.subr.mxu0 0.0
    %68 = vmatpush1.msra.mxu0 0.0
    %69 = vmatprep.subr.mxu0 0.0
    %70 = vmatpush1.msra.mxu0 0.0
    %71 = vmatprep.subr.mxu0 0.0
    %72 = vmatpush1.msra.mxu0 0.0
    %73 = vmatprep.subr.mxu0 0.0
    %74 = vmatpush1.msra.mxu0 0.0
    %75 = vmatprep.subr.mxu0 0.0
    %76 = vmatpush1.msra.mxu0 0.0
    %77 = vmatprep.subr.mxu0 0.0
    %78 = vmatpush1.msra.mxu0 0.0
    %79 = vmatprep.subr.mxu0 0.0
    %80 = vmatpush1.msra.mxu0 0.0
    %81 = vmatprep.subr.mxu0 0.0
    %82 = vmatpush1.msra.mxu0 0.0
    %83 = vmatprep.subr.mxu0 0.0
    %84 = vmatpush1.msra.mxu0 0.0
    %85 = vmatprep.subr.mxu0 0.0
    %86 = vmatpush1.msra.mxu0 0.0
    %87 = vmatprep.subr.mxu0 0.0
    %88 = vmatpush1.msra.mxu0 0.0
    %89 = vmatprep.subr.mxu0 0.0
    %90 = vmatpush1.msra.mxu0 0.0
    %91 = vmatprep.subr.mxu0 0.0
    %92 = vmatpush1.msra.mxu0 0.0
    %93 = vmatprep.subr.mxu0 0.0
    %94 = vmatpush1.msra.mxu0 0.0
    %95 = vmatprep.subr.mxu0 0.0
    %96 = vmatpush1.msra.mxu0 0.0
    %97 = vmatprep.subr.mxu0 0.0
    %98 = vmatpush1.msra.mxu0 0.0
    %99 = vmatprep.subr.mxu0 0.0
    %100 = vmatpush1.msra.mxu0 0.0
    %101 = vmatprep.subr.mxu0 0.0
    %102 = vmatpush1.msra.mxu0 0.0
    %103 = vmatprep.subr.mxu0 0.0
    %104 = vmatpush1.msra.mxu0 0.0
    %105 = vmatprep.subr.mxu0 0.0
    %106 = vmatpush1.msra.mxu0 0.0
    %107 = vmatprep.subr.mxu0 0.0
    %108 = vmatpush1.msra.mxu0 0.0
    %109 = vmatprep.subr.mxu0 0.0
    %110 = vmatpush1.msra.mxu0 0.0
    %111 = vmatprep.mubr.f32.mxu0 0.0
    %112 = vmatmul.mubr.f32.gmra.mrb[0].mxu0 %v42
    %v113 = vpop.f32.mrb[0].mxu0
    %v114 = vadd.f32 %v38, %v113
    %v115 = vpop.f32.mrb[0].mxu0
    %116 = vmatprep.mubr.f32.mxu0 0.0
    %117 = vmatmul.mubr.f32.gmra.mrb[0].mxu0 %v45
    %v118 = vpop.f32.mrb[0].mxu0
    %v119 = vadd.f32 %v38, %v118
    %v120 = vpop.f32.mrb[0].mxu0
    %121 = vdwg.mxu0
    %v122 = vmax.f32 %v114, 0.0
    %v123 = vmax.f32 %v119, 0.0
    %v124 = vld [vmem:[%s3] sm:$0xff]
    %v125 = vld [vmem:[%s3 + $0x8] sm:$0xff]
    %v126 = vld [vmem:[%s3 + $0x10] sm:$0xff]
    %v127 = vld [vmem:[%s3 + $0x18] sm:$0xff]
    %v128 = vld [vmem:[%s3 + $0x20] sm:$0xff]
    %v129 = vld [vmem:[%s3 + $0x28] sm:$0xff]
    %v130 = vld [vmem:[%s3 + $0x30] sm:$0xff]
    %v131 = vld [vmem:[%s3 + $0x38] sm:$0xff]
    %v132 = vld [vmem:[%s3 + $0x40] sm:$0xff]
    %v133 = vld [vmem:[%s3 + $0x48] sm:$0xff]
    %v134 = vld [vmem:[%s3 + $0x50] sm:$0xff]
    %v135 = vld [vmem:[%s3 + $0x58] sm:$0xff]
    %v136 = vld [vmem:[%s3 + $0x60] sm:$0xff]
    %v137 = vld [vmem:[%s3 + $0x68] sm:$0xff]
    %v138 = vld [vmem:[%s3 + $0x70] sm:$0xff]
    %v139 = vld [vmem:[%s3 + $0x78] sm:$0xff]
    %v140 = vld [vmem:[%s4] sm:$0x1]
    %v142 = vlaneseq
    %v143 = vshrl.u32 %v142, 7
    %v144 = vsub.s32 0, %v143
    %v145 = vrot.slane %v140, %v144
    %147 = vmatprep.subr.mxu0 0.0
    %148 = vmatpush1.msra.mxu0 %v124
    %149 = vmatprep.subr.mxu0 0.0
    %150 = vmatpush1.msra.mxu0 %v125
    %151 = vmatprep.subr.mxu0 0.0
    %152 = vmatpush1.msra.mxu0 %v126
    %153 = vmatprep.subr.mxu0 0.0
    %154 = vmatpush1.msra.mxu0 %v127
    %155 = vmatprep.subr.mxu0 0.0
    %156 = vmatpush1.msra.mxu0 %v128
    %157 = vmatprep.subr.mxu0 0.0
    %158 = vmatpush1.msra.mxu0 %v129
    %159 = vmatprep.subr.mxu0 0.0
    %160 = vmatpush1.msra.mxu0 %v130
    %161 = vmatprep.subr.mxu0 0.0
    %162 = vmatpush1.msra.mxu0 %v131
    %163 = vmatprep.subr.mxu0 0.0
    %164 = vmatpush1.msra.mxu0 %v132
    %165 = vmatprep.subr.mxu0 0.0
    %166 = vmatpush1.msra.mxu0 %v133
    %167 = vmatprep.subr.mxu0 0.0
    %168 = vmatpush1.msra.mxu0 %v134
    %169 = vmatprep.subr.mxu0 0.0
    %170 = vmatpush1.msra.mxu0 %v135
    %171 = vmatprep.subr.mxu0 0.0
    %172 = vmatpush1.msra.mxu0 %v136
    %173 = vmatprep.subr.mxu0 0.0
    %174 = vmatpush1.msra.mxu0 %v137
    %175 = vmatprep.subr.mxu0 0.0
    %176 = vmatpush1.msra.mxu0 %v138
    %177 = vmatprep.subr.mxu0 0.0
    %178 = vmatpush1.msra.mxu0 %v139
    %179 = vmatprep.subr.mxu0 0.0
    %180 = vmatpush1.msra.mxu0 0.0
    %181 = vmatprep.subr.mxu0 0.0
    %182 = vmatpush1.msra.mxu0 0.0
    %183 = vmatprep.subr.mxu0 0.0
    %184 = vmatpush1.msra.mxu0 0.0
    %185 = vmatprep.subr.mxu0 0.0
    %186 = vmatpush1.msra.mxu0 0.0
    %187 = vmatprep.subr.mxu0 0.0
    %188 = vmatpush1.msra.mxu0 0.0
    %189 = vmatprep.subr.mxu0 0.0
    %190 = vmatpush1.msra.mxu0 0.0
    %191 = vmatprep.subr.mxu0 0.0
    %192 = vmatpush1.msra.mxu0 0.0
    %193 = vmatprep.subr.mxu0 0.0
    %194 = vmatpush1.msra.mxu0 0.0
    %195 = vmatprep.subr.mxu0 0.0
    %196 = vmatpush1.msra.mxu0 0.0
    %197 = vmatprep.subr.mxu0 0.0
    %198 = vmatpush1.msra.mxu0 0.0
    %199 = vmatprep.subr.mxu0 0.0
    %200 = vmatpush1.msra.mxu0 0.0
    %201 = vmatprep.subr.mxu0 0.0
    %202 = vmatpush1.msra.mxu0 0.0
    %203 = vmatprep.subr.mxu0 0.0
    %204 = vmatpush1.msra.mxu0 0.0
    %205 = vmatprep.subr.mxu0 0.0
    %206 = vmatpush1.msra.mxu0 0.0
    %207 = vmatprep.subr.mxu0 0.0
    %208 = vmatpush1.msra.mxu0 0.0
    %209 = vmatprep.subr.mxu0 0.0
    %210 = vmatpush1.msra.mxu0 0.0
    %211 = vmatprep.mubr.f32.mxu0 0.0
    %212 = vmatmul.mubr.f32.gmra.mrb[0].mxu0 %v122
    %v213 = vpop.f32.mrb[0].mxu0
    %v214 = vadd.f32 %v145, %v213
    %v215 = vpop.f32.mrb[0].mxu0
    %216 = vmatprep.mubr.f32.mxu0 0.0
    %217 = vmatmul.mubr.f32.gmra.mrb[0].mxu0 %v123
    %v218 = vpop.f32.mrb[0].mxu0
    %v219 = vadd.f32 %v145, %v218
    %v220 = vpop.f32.mrb[0].mxu0
    %221 = vdwg.mxu0
    %v222 = vmax.f32 %v214, 0.0
    %v223 = vmax.f32 %v219, 0.0
    %v224 = vld [vmem:[%s5] sm:$0xff]
    %v225 = vld [vmem:[%s5 + $0x8] sm:$0xff]
    %v226 = vld [vmem:[%s5 + $0x10] sm:$0xff]
    %v227 = vld [vmem:[%s5 + $0x18] sm:$0xff]
    %v228 = vld [vmem:[%s5 + $0x20] sm:$0xff]
    %v229 = vld [vmem:[%s5 + $0x28] sm:$0xff]
    %v230 = vld [vmem:[%s5 + $0x30] sm:$0xff]
    %v231 = vld [vmem:[%s5 + $0x38] sm:$0xff]
    %v232 = vld [vmem:[%s6] sm:$0x1]
    %v234 = vlaneseq
    %v235 = vshrl.u32 %v234, 7
    %v236 = vsub.s32 0, %v235
    %v237 = vrot.slane %v232, %v236
    %vm239 = vcmask 523264
    %v241 = vsel %vm239, %v222, 0
    %v244 = vsel %vm239, %v223, 0
    %246 = vmatprep.subr.mxu0 0.0
    %247 = vmatpush1.msra.mxu0 %v224
    %248 = vmatprep.subr.mxu0 0.0
    %249 = vmatpush1.msra.mxu0 %v225
    %250 = vmatprep.subr.mxu0 0.0
    %251 = vmatpush1.msra.mxu0 %v226
    %252 = vmatprep.subr.mxu0 0.0
    %253 = vmatpush1.msra.mxu0 %v227
    %254 = vmatprep.subr.mxu0 0.0
    %255 = vmatpush1.msra.mxu0 %v228
    %256 = vmatprep.subr.mxu0 0.0
    %257 = vmatpush1.msra.mxu0 %v229
    %258 = vmatprep.subr.mxu0 0.0
    %259 = vmatpush1.msra.mxu0 %v230
    %260 = vmatprep.subr.mxu0 0.0
    %261 = vmatpush1.msra.mxu0 %v231
    %262 = vmatprep.subr.mxu0 0.0
    %263 = vmatpush1.msra.mxu0 0.0
    %264 = vmatprep.subr.mxu0 0.0
    %265 = vmatpush1.msra.mxu0 0.0
    %266 = vmatprep.subr.mxu0 0.0
    %267 = vmatpush1.msra.mxu0 0.0
    %268 = vmatprep.subr.mxu0 0.0
    %269 = vmatpush1.msra.mxu0 0.0
    %270 = vmatprep.subr.mxu0 0.0
    %271 = vmatpush1.msra.mxu0 0.0
    %272 = vmatprep.subr.mxu0 0.0
    %273 = vmatpush1.msra.mxu0 0.0
    %274 = vmatprep.subr.mxu0 0.0
    %275 = vmatpush1.msra.mxu0 0.0
    %276 = vmatprep.subr.mxu0 0.0
    %277 = vmatpush1.msra.mxu0 0.0
    %278 = vmatprep.subr.mxu0 0.0
    %279 = vmatpush1.msra.mxu0 0.0
    %280 = vmatprep.subr.mxu0 0.0
    %281 = vmatpush1.msra.mxu0 0.0
    %282 = vmatprep.subr.mxu0 0.0
    %283 = vmatpush1.msra.mxu0 0.0
    %284 = vmatprep.subr.mxu0 0.0
    %285 = vmatpush1.msra.mxu0 0.0
    %286 = vmatprep.subr.mxu0 0.0
    %287 = vmatpush1.msra.mxu0 0.0
    %288 = vmatprep.subr.mxu0 0.0
    %289 = vmatpush1.msra.mxu0 0.0
    %290 = vmatprep.subr.mxu0 0.0
    %291 = vmatpush1.msra.mxu0 0.0
    %292 = vmatprep.subr.mxu0 0.0
    %293 = vmatpush1.msra.mxu0 0.0
    %294 = vmatprep.subr.mxu0 0.0
    %295 = vmatpush1.msra.mxu0 0.0
    %296 = vmatprep.subr.mxu0 0.0
    %297 = vmatpush1.msra.mxu0 0.0
    %298 = vmatprep.subr.mxu0 0.0
    %299 = vmatpush1.msra.mxu0 0.0
    %300 = vmatprep.subr.mxu0 0.0
    %301 = vmatpush1.msra.mxu0 0.0
    %302 = vmatprep.subr.mxu0 0.0
    %303 = vmatpush1.msra.mxu0 0.0
    %304 = vmatprep.subr.mxu0 0.0
    %305 = vmatpush1.msra.mxu0 0.0
    %306 = vmatprep.subr.mxu0 0.0
    %307 = vmatpush1.msra.mxu0 0.0
    %308 = vmatprep.subr.mxu0 0.0
    %309 = vmatpush1.msra.mxu0 0.0
    %310 = vmatprep.mubr.f32.mxu0 0.0
    %311 = vmatmul.mubr.f32.gmra.mrb[0].mxu0 %v241
    %v312 = vpop.f32.mrb[0].mxu0
    %v313 = vadd.f32 %v237, %v312
    %v314 = vpop.f32.mrb[0].mxu0
    %315 = vmatprep.mubr.f32.mxu0 0.0
    %316 = vmatmul.mubr.f32.gmra.mrb[0].mxu0 %v244
    %v317 = vpop.f32.mrb[0].mxu0
    %v318 = vadd.f32 %v237, %v317
    %v319 = vpop.f32.mrb[0].mxu0
    %320 = vdwg.mxu0
    %321 = vst [vmem:[#allocation2] sm:$0xff] %v313
    %322 = vst [vmem:[#allocation2 + $0x8] sm:$0xff] %v318
    // Predicated region
    $region30: #{tpu_custom_call.1} parent=1 // pred_check
      _
    $region31: #{tpu_custom_call.1} parent=1 // pred_check_branch
      %324 = sbr.rel (0) target = $region33
    $region32: #{tpu_custom_call.1} parent=1 // pred_region
      %s326 = ssub.s32 256, 256
      %327 = vsyncadd [#allocation3], %s326
      %s328 = sshll.u32 [#allocation2], 4
      %s329 = int_to_ptr.vmem [resolvable:$true] %s328
      %334 = dma.vmem_to_hbm [thread:$0]  %s329, 256, %s7, [#allocation3], 128, 128, 8
    $region33: #{tpu_custom_call.1} parent=1 // pred_fallthru
      _
    // Predicated region
    $region34: #{tpu_custom_call.1} parent=1 // pred_check
      _
    $region35: #{tpu_custom_call.1} parent=1 // pred_check_branch
      %336 = sbr.rel (0) target = $region37
    $region36: #{tpu_custom_call.1} parent=1 // pred_region
      %337 = dma.done [#allocation3], 256
    $region37: #{tpu_custom_call.1} parent=1 // pred_fallthru
      _
    %338 = vsyncpa [#allocation3], 1

</llo_original>
